<compile_context>
chip_gen: v7x
topology: tpu7x:2x2x1
jax: 0.10.0
libtpu: 0.0.40
codegen_flags: <defaults>
</compile_context>

<pallas_src>
import functools

import jax
import jax.numpy as jnp
from jax import lax
from jax.experimental import pallas as pl
from jax.experimental.pallas import tpu as pltpu


def _round_up(x, m):
    return (x + m - 1) // m * m


# -----------------------------------------------------------------------------
# Kernel 1: fused matmul + (BN scale/shift | bias) + optional residual + ReLU.
# Used for every convolution (via im2col) and for the final embedding Linear.
# -----------------------------------------------------------------------------
def _matmul_epilogue_kernel(x_ref, w_ref, scale_ref, bias_ref, *rest, relu, has_residual):
    if has_residual:
        res_ref, out_ref = rest
    else:
        (out_ref,) = rest
    # bf16 operands, f32 accumulation on the MXU.
    y = jnp.dot(x_ref[...], w_ref[...], preferred_element_type=jnp.float32)
    # Folded BatchNorm / bias epilogue (f32, VPU).
    y = y * scale_ref[...] + bias_ref[...]
    if has_residual:
        y = y + res_ref[...]          # bottleneck skip connection fused in-kernel
    if relu:
        y = jnp.maximum(y, 0.0)
    out_ref[...] = y.astype(out_ref.dtype)


@functools.partial(jax.jit, static_argnames=("relu",))
def _fused_matmul(x, w, scale, bias, residual=None, *, relu=False):
    """(M, K) @ (K, N) * scale + bias [+ residual] [relu], lane-dense & padded."""
    M, K = x.shape
    N = w.shape[1]
    Kp = _round_up(K, 128)                      # lane-dense contraction dim
    Np = _round_up(N, 128)                      # lane-dense output columns
    tm = 128 if M >= 128 else _round_up(M, 16)  # 16-sublane aligned rows (bf16 packing)
    Mp = _round_up(M, tm)
    tn = 256 if Np % 256 == 0 else 128          # wide, unmasked vst tiles

    xp = jnp.zeros((Mp, Kp), jnp.bfloat16).at[:M, :K].set(x.astype(jnp.bfloat16))
    wp = jnp.zeros((Kp, Np), jnp.bfloat16).at[:K, :N].set(w.astype(jnp.bfloat16))
    sp = jnp.zeros((1, Np), jnp.float32).at[0, :N].set(scale.astype(jnp.float32))
    bp = jnp.zeros((1, Np), jnp.float32).at[0, :N].set(bias.astype(jnp.float32))

    has_residual = residual is not None
    inputs = [xp, wp, sp, bp]
    in_specs = [
        pl.BlockSpec((tm, Kp), lambda i, j: (i, 0)),   # activation row tile
        pl.BlockSpec((Kp, tn), lambda i, j: (0, j)),   # weight column tile
        pl.BlockSpec((1, tn), lambda i, j: (0, j)),    # BN scale (per-channel)
        pl.BlockSpec((1, tn), lambda i, j: (0, j)),    # BN shift / bias
    ]
    if has_residual:
        rp = jnp.zeros((Mp, Np), jnp.float32).at[:M, :N].set(residual.astype(jnp.float32))
        inputs.append(rp)
        in_specs.append(pl.BlockSpec((tm, tn), lambda i, j: (i, j)))

    kernel = functools.partial(_matmul_epilogue_kernel, relu=relu, has_residual=has_residual)
    flops = 2 * Mp * Kp * Np
    bytes_accessed = ((Mp * Kp + Kp * Np) * 2 + Mp * Np * 4
                      + (Mp * Np * 4 if has_residual else 0))

    out = pl.pallas_call(
        kernel,
        out_shape=jax.ShapeDtypeStruct((Mp, Np), jnp.float32),
        grid_spec=pltpu.PrefetchScalarGridSpec(
            num_scalar_prefetch=0,
            grid=(Mp // tm, Np // tn),
            in_specs=in_specs,
            out_specs=pl.BlockSpec((tm, tn), lambda i, j: (i, j)),
        ),
        compiler_params=pltpu.CompilerParams(
            dimension_semantics=("parallel", "parallel"),   # megacore-shardable on v7x
            vmem_limit_bytes=32 * 1024 * 1024,               # explicit VMEM budget
        ),
        cost_estimate=pl.CostEstimate(flops=flops, transcendentals=0,
                                      bytes_accessed=bytes_accessed),
    )(*inputs)
    return out[:M, :N]


# -----------------------------------------------------------------------------
# Kernel 2: max over the 9 pooling-window taps (3x3, stride 2, pad 1 stem pool).
# -----------------------------------------------------------------------------
def _maxpool_kernel(p_ref, out_ref):
    m = p_ref[0]
    for k in range(1, p_ref.shape[0]):   # static unrolled VPU max over taps
        m = jnp.maximum(m, p_ref[k])
    out_ref[...] = m


@jax.jit
def _maxpool2d_pallas(x):
    """x: (B, H, W, C) f32 -> 3x3/stride2/pad1 max pool, as in the ResNet stem."""
    B, H, W, C = x.shape
    neg = jnp.float32(jnp.finfo(jnp.float32).min)
    xp = jnp.pad(x, ((0, 0), (1, 1), (1, 1), (0, 0)), constant_values=neg)
    OH = (H + 2 - 3) // 2 + 1
    OW = (W + 2 - 3) // 2 + 1
    taps = []
    for i in range(3):
        for j in range(3):
            t = lax.slice(xp, (0, i, j, 0),
                          (B, i + (OH - 1) * 2 + 1, j + (OW - 1) * 2 + 1, C),
                          (1, 2, 2, 1))
            taps.append(t.reshape(B * OH * OW, C))
    M = B * OH * OW
    Mp, Cp = _round_up(M, 8), _round_up(C, 128)
    p_pad = jnp.full((9, Mp, Cp), neg, jnp.float32).at[:, :M, :C].set(jnp.stack(taps, 0))
    out = pl.pallas_call(
        _maxpool_kernel,
        out_shape=jax.ShapeDtypeStruct((Mp, Cp), jnp.float32),
        in_specs=[pl.BlockSpec(memory_space=pltpu.MemorySpace.VMEM)],
        out_specs=pl.BlockSpec(memory_space=pltpu.MemorySpace.VMEM),
    )(p_pad)
    return out[:M, :C].reshape(B, OH, OW, C)


# -----------------------------------------------------------------------------
# Conv = im2col (glue) + fused Pallas matmul.
# -----------------------------------------------------------------------------
def _conv2d_bn(x, w, scale, shift, *, stride, padding, relu, residual=None):
    """x: (B,H,W,Cin) f32; w: (KH,KW,Cin,Cout) f32; BN folded into scale/shift."""
    B, H, W, Cin = x.shape
    KH, KW, _, Cout = w.shape
    if padding:
        x = jnp.pad(x, ((0, 0), (padding, padding), (padding, padding), (0, 0)))
    Hp, Wp = H + 2 * padding, W + 2 * padding
    OH = (Hp - KH) // stride + 1
    OW = (Wp - KW) // stride + 1
    taps = []
    for i in range(KH):
        for j in range(KW):
            taps.append(lax.slice(
                x, (0, i, j, 0),
                (B, i + (OH - 1) * stride + 1, j + (OW - 1) * stride + 1, Cin),
                (1, stride, stride, 1)))
    patches = jnp.concatenate(taps, axis=-1).reshape(B * OH * OW, KH * KW * Cin)
    res2d = None if residual is None else residual.reshape(B * OH * OW, Cout)
    out = _fused_matmul(patches, w.reshape(KH * KW * Cin, Cout), scale, shift,
                        res2d, relu=relu)
    return out.reshape(B, OH, OW, Cout)


def _bottleneck(x, blk):
    s = blk["stride"]
    c1, c2, c3 = blk["conv1"], blk["conv2"], blk["conv3"]
    out = _conv2d_bn(x, c1["w"], c1["scale"], c1["shift"], stride=1, padding=0, relu=True)
    out = _conv2d_bn(out, c2["w"], c2["scale"], c2["shift"], stride=s, padding=1, relu=True)
    if blk["downsample"] is not None:
        d = blk["downsample"]
        identity = _conv2d_bn(x, d["w"], d["scale"], d["shift"],
                              stride=s, padding=0, relu=False)
    else:
        identity = x
    # Residual add + final ReLU fused into the expand conv's epilogue (one HBM pass).
    return _conv2d_bn(out, c3["w"], c3["scale"], c3["shift"], stride=1, padding=0,
                      relu=True, residual=identity)


def encoder_cnn_forward(images, params):
    """images: (B, 3, H, W) f32 (NCHW, PyTorch layout) -> features (B, embed_size)."""
    x = jnp.transpose(images, (0, 2, 3, 1))   # NHWC: channels on the 128-lane axis
    c = params["conv1"]
    x = _conv2d_bn(x, c["w"], c["scale"], c["shift"], stride=2, padding=3, relu=True)
    x = _maxpool2d_pallas(x)
    for name in ("layer1", "layer2", "layer3", "layer4"):
        for blk in params[name]:
            x = _bottleneck(x, blk)
    # TODO(synk): AdaptiveAvgPool2d(1) + flatten is a trivial global mean; kept as JAX glue.
    feats = jnp.mean(x, axis=(1, 2))          # (B, 2048)
    ones = jnp.ones((params["embed_w"].shape[1],), jnp.float32)
    return _fused_matmul(feats, params["embed_w"], ones, params["embed_b"], relu=False)


# -----------------------------------------------------------------------------
# Deterministic frozen parameters (stand-in for pretrained weights).
# -----------------------------------------------------------------------------
_STAGES = (
    ("layer1", 64, 256, 3, 1),
    ("layer2", 128, 512, 4, 2),
    ("layer3", 256, 1024, 6, 2),
    ("layer4", 512, 2048, 3, 2),
)


def _init_conv_bn(key, kh, kw, cin, cout):
    k_w, k_g, k_b, k_m, k_v = jax.random.split(key, 5)
    fan_in = kh * kw * cin
    w = jax.random.normal(k_w, (kh, kw, cin, cout), jnp.float32) * jnp.sqrt(2.0 / fan_in)
    gamma = 1.0 + 0.1 * jax.random.normal(k_g, (cout,), jnp.float32)
    beta = 0.1 * jax.random.normal(k_b, (cout,), jnp.float32)
    mean = 0.1 * jax.random.normal(k_m, (cout,), jnp.float32)
    var = 1.0 + 0.1 * jax.random.uniform(k_v, (cout,), jnp.float32)
    scale = gamma / jnp.sqrt(var + 1e-5)      # inference-mode BN folded to scale/shift
    shift = beta - mean * scale
    return {"w": w, "scale": scale, "shift": shift}


def init_encoder_params(key, embed_size):
    keys = jax.random.split(key, 7)
    params = {"conv1": _init_conv_bn(keys[0], 7, 7, 3, 64)}
    cin = 64
    for idx, (name, width, cout, nblocks, stride) in enumerate(_STAGES):
        bkeys = jax.random.split(keys[1 + idx], nblocks)
        blocks = []
        for b in range(nblocks):
            s = stride if b == 0 else 1
            bk = jax.random.split(bkeys[b], 4)
            blocks.append({
                "stride": s,
                "conv1": _init_conv_bn(bk[0], 1, 1, cin, width),
                "conv2": _init_conv_bn(bk[1], 3, 3, width, width),
                "conv3": _init_conv_bn(bk[2], 1, 1, width, cout),
                "downsample": (_init_conv_bn(bk[3], 1, 1, cin, cout)
                               if (s != 1 or cin != cout) else None),
            })
            cin = cout
        params[name] = blocks
    bound = 1.0 / (cin ** 0.5)
    params["embed_w"] = jax.random.uniform(keys[5], (cin, embed_size), jnp.float32, -bound, bound)
    params["embed_b"] = jax.random.uniform(keys[6], (embed_size,), jnp.float32, -bound, bound)
    return params


# -----------------------------------------------------------------------------
# Pure-JAX reference using the same bf16 operand rounding / f32 accumulation.
# -----------------------------------------------------------------------------
def reference_forward(images, params):
    bf = lambda a: a.astype(jnp.bfloat16)

    def conv_bn(x, p, stride, padding, relu, residual=None):
        y = lax.conv_general_dilated(
            bf(x), bf(p["w"]), (stride, stride),
            ((padding, padding), (padding, padding)),
            dimension_numbers=("NHWC", "HWIO", "NHWC"),
            preferred_element_type=jnp.float32)
        y = y * p["scale"] + p["shift"]
        if residual is not None:
            y = y + residual
        if relu:
            y = jnp.maximum(y, 0.0)
        return y

    x = jnp.transpose(images, (0, 2, 3, 1))
    x = conv_bn(x, params["conv1"], 2, 3, True)
    x = lax.reduce_window(x, jnp.array(-jnp.inf, x.dtype), lax.max,
                          (1, 3, 3, 1), (1, 2, 2, 1),
                          ((0, 0), (1, 1), (1, 1), (0, 0)))
    for name in ("layer1", "layer2", "layer3", "layer4"):
        for blk in params[name]:
            s = blk["stride"]
            out = conv_bn(x, blk["conv1"], 1, 0, True)
            out = conv_bn(out, blk["conv2"], s, 1, True)
            identity = (conv_bn(x, blk["downsample"], s, 0, False)
                        if blk["downsample"] is not None else x)
            x = conv_bn(out, blk["conv3"], 1, 0, True, residual=identity)
    feats = jnp.mean(x, axis=(1, 2))
    return (jnp.dot(bf(feats), bf(params["embed_w"]),
                    preferred_element_type=jnp.float32) + params["embed_b"])


if __name__ == "__main__":
    embed_size = 32
    B, C, H, W = 2, 3, 16, 16

    key = jax.random.PRNGKey(0)
    k_img, k_par = jax.random.split(key)
    images = jax.random.normal(k_img, (B, C, H, W), jnp.float32)
    params = init_encoder_params(k_par, embed_size)

    feats = encoder_cnn_forward(images, params)
    feats = jax.block_until_ready(feats)
    assert feats.shape == (B, embed_size)
    assert bool(jnp.all(jnp.isfinite(feats)))

    ref = jax.block_until_ready(reference_forward(images, params))
    err = jnp.max(jnp.abs(feats - ref))
    tol = 2e-2 * jnp.maximum(jnp.max(jnp.abs(ref)), 1.0)
    assert bool(err < tol), f"mismatch vs reference (max abs err {err})"

    print("KERNEL_OK")
</pallas_src>

<mosaic_0001>
module attributes {stable_mosaic.version = 11 : i64} {
  func.func @_matmul_epilogue_kernel(%arg0: i32, %arg1: i32, %arg2: memref<128x256xbf16, #tpu.memory_space<vmem>>, %arg3: memref<256x128xbf16, #tpu.memory_space<vmem>>, %arg4: memref<1x128xf32, #tpu.memory_space<vmem>>, %arg5: memref<1x128xf32, #tpu.memory_space<vmem>>, %arg6: memref<128x128xf32, #tpu.memory_space<vmem>>) attributes {dimension_semantics = [#tpu.dimension_semantics<parallel>, #tpu.dimension_semantics<parallel>], iteration_bounds = array<i64: 1, 1>, scalar_prefetch = 0 : i64, scratch_operands = 0 : i64, tpu.core_type = #tpu.core_type<tc>, window_params = [{transform_indices = @transform_0, window_bounds = array<i64: 128, 256>}, {transform_indices = @transform_1, window_bounds = array<i64: 256, 128>}, {transform_indices = @transform_2, window_bounds = array<i64: 1, 128>}, {transform_indices = @transform_3, window_bounds = array<i64: 1, 128>}, {transform_indices = @transform_4, window_bounds = array<i64: 128, 128>}]} {
    %c0 = arith.constant 0 : index
    %c0_0 = arith.constant 0 : index
    %0 = vector.load %arg2[%c0, %c0_0] : memref<128x256xbf16, #tpu.memory_space<vmem>>, vector<128x256xbf16>
    %c0_1 = arith.constant 0 : index
    %c0_2 = arith.constant 0 : index
    %1 = vector.load %arg3[%c0_1, %c0_2] : memref<256x128xbf16, #tpu.memory_space<vmem>>, vector<256x128xbf16>
    %cst = arith.constant dense<0.000000e+00> : vector<128x128xf32>
    %2 = tpu.matmul %0, %1, %cst {dimension_numbers = #tpu.dot_dimension_numbers<[1], [0], [0], [1], [0, 0, 1, 1], [], []>} : vector<128x256xbf16>, vector<256x128xbf16>, vector<128x128xf32> -> vector<128x128xf32>
    %c0_3 = arith.constant 0 : index
    %c0_4 = arith.constant 0 : index
    %3 = vector.load %arg4[%c0_3, %c0_4] : memref<1x128xf32, #tpu.memory_space<vmem>>, vector<1x128xf32>
    %4 = vector.broadcast %3 : vector<1x128xf32> to vector<128x128xf32>
    %5 = arith.mulf %2, %4 : vector<128x128xf32>
    %c0_5 = arith.constant 0 : index
    %c0_6 = arith.constant 0 : index
    %6 = vector.load %arg5[%c0_5, %c0_6] : memref<1x128xf32, #tpu.memory_space<vmem>>, vector<1x128xf32>
    %7 = vector.broadcast %6 : vector<1x128xf32> to vector<128x128xf32>
    %8 = arith.addf %5, %7 : vector<128x128xf32>
    %cst_7 = arith.constant 0.000000e+00 : f32
    %9 = vector.broadcast %cst_7 : f32 to vector<128x128xf32>
    %10 = arith.maximumf %8, %9 : vector<128x128xf32>
    %c0_8 = arith.constant 0 : index
    %c0_9 = arith.constant 0 : index
    %11 = vector.load %arg6[%c0_8, %c0_9] : memref<128x128xf32, #tpu.memory_space<vmem>>, vector<128x128xf32>
    tpu.vector_store %arg6[%c0_8, %c0_9], %10 {strides = array<i32>} : memref<128x128xf32, #tpu.memory_space<vmem>>, vector<128x128xf32>,
    return
  }
  func.func @transform_0(%arg0: i32, %arg1: i32) -> (i32, i32) {
    %c0_i32 = arith.constant 0 : i32
    %c0_i32_0 = arith.constant 0 : i32
    return %arg0, %c0_i32 : i32, i32
  }
  func.func @transform_1(%arg0: i32, %arg1: i32) -> (i32, i32) {
    %c0_i32 = arith.constant 0 : i32
    %c0_i32_0 = arith.constant 0 : i32
    return %c0_i32, %arg1 : i32, i32
  }
  func.func @transform_2(%arg0: i32, %arg1: i32) -> (i32, i32) {
    %c0_i32 = arith.constant 0 : i32
    %c0_i32_0 = arith.constant 0 : i32
    return %c0_i32, %arg1 : i32, i32
  }
  func.func @transform_3(%arg0: i32, %arg1: i32) -> (i32, i32) {
    %c0_i32 = arith.constant 0 : i32
    %c0_i32_0 = arith.constant 0 : i32
    return %c0_i32, %arg1 : i32, i32
  }
  func.func @transform_4(%arg0: i32, %arg1: i32) -> (i32, i32) {
    %c0_i32 = arith.constant 0 : i32
    return %arg0, %arg1 : i32, i32
  }
}

</mosaic_0001>

<llo_original>
// kernel: _fused_matmul.1
$region0: #{_fused_matmul.1}
  #allocation0 [shape = 'u32[]', space=smem, size = 0x4, offset = 0x4, fixed_abs, tag = 'smem constant byte address 0x4 - core index']
  #allocation1 [shape = 'u32[144,128]{1,0:T(1,128)}', space=vmem, size = 0x12000, scoped, tag = 'internal scratch']
  %s0 = inlined_call_operand.vmem [shape: bf16[128,256], index: 0, kind: input, shape index: {}]
  %s1 = inlined_call_operand.vmem [shape: bf16[256,128], index: 1, kind: input, shape index: {}]
  %s2 = inlined_call_operand.vmem [shape: f32[1,128], index: 2, kind: input, shape index: {}]
  %s3 = inlined_call_operand.vmem [shape: f32[1,128], index: 3, kind: input, shape index: {}]
  %s4 = inlined_call_operand.vmem [shape: f32[128,128], index: 4, kind: output, shape index: {}]
  %s5 = sld [smem:[#allocation0]]
  $region26: #{_fused_matmul.1} parent=0
    _
  %s7 = ssub.s32 1, %s5
  %s8 = scalar_select 0, %s7, %s5
  // Predicated region
  $region2: #{_fused_matmul.1} parent=0 // pred_check
    _
  $region3: #{_fused_matmul.1} parent=0 // pred_check_branch
    %10 = sbr.rel (0) target = $region5
  $region4: #{_fused_matmul.1} parent=0 // pred_region
    _
  $region5: #{_fused_matmul.1} parent=0 // pred_fallthru
    _
  // Predicated region
  $region6: #{_fused_matmul.1} parent=0 // pred_check
    _
  $region7: #{_fused_matmul.1} parent=0 // pred_check_branch
    %12 = sbr.rel (0) target = $region9
  $region8: #{_fused_matmul.1} parent=0 // pred_region
    _
  $region9: #{_fused_matmul.1} parent=0 // pred_fallthru
    _
  // Predicated region
  $region10: #{_fused_matmul.1} parent=0 // pred_check
    _
  $region11: #{_fused_matmul.1} parent=0 // pred_check_branch
    %14 = sbr.rel (0) target = $region13
  $region12: #{_fused_matmul.1} parent=0 // pred_region
    _
  $region13: #{_fused_matmul.1} parent=0 // pred_fallthru
    _
  // Predicated region
  $region14: #{_fused_matmul.1} parent=0 // pred_check
    _
  $region15: #{_fused_matmul.1} parent=0 // pred_check_branch
    %16 = sbr.rel (0) target = $region17
  $region16: #{_fused_matmul.1} parent=0 // pred_region
    _
  $region17: #{_fused_matmul.1} parent=0 // pred_fallthru
    _
  %v18 = vld [vmem:[%s0] sm:$0xff]
  %v19 = vld [vmem:[%s0 + $0x8] sm:$0xff]
  %v20 = vld [vmem:[%s0 + $0x10] sm:$0xff]
  %v21 = vld [vmem:[%s0 + $0x18] sm:$0xff]
  %v22 = vld [vmem:[%s0 + $0x20] sm:$0xff]
  %v23 = vld [vmem:[%s0 + $0x28] sm:$0xff]
  %v24 = vld [vmem:[%s0 + $0x30] sm:$0xff]
  %v25 = vld [vmem:[%s0 + $0x38] sm:$0xff]
  %v26 = vld [vmem:[%s0 + $0x40] sm:$0xff]
  %v27 = vld [vmem:[%s0 + $0x48] sm:$0xff]
  %v28 = vld [vmem:[%s0 + $0x50] sm:$0xff]
  %v29 = vld [vmem:[%s0 + $0x58] sm:$0xff]
  %v30 = vld [vmem:[%s0 + $0x60] sm:$0xff]
  %v31 = vld [vmem:[%s0 + $0x68] sm:$0xff]
  %v32 = vld [vmem:[%s0 + $0x70] sm:$0xff]
  %v33 = vld [vmem:[%s0 + $0x78] sm:$0xff]
  %v34 = vld [vmem:[%s1] sm:$0xf]
  %v35 = vld [vmem:[%s1 + $0x4] sm:$0xf]
  %v36 = vld [vmem:[%s1 + $0x8] sm:$0xf]
  %v37 = vld [vmem:[%s1 + $0xc] sm:$0xf]
  %v38 = vld [vmem:[%s1 + $0x10] sm:$0xf]
  %v39 = vld [vmem:[%s1 + $0x14] sm:$0xf]
  %v40 = vld [vmem:[%s1 + $0x18] sm:$0xf]
  %v41 = vld [vmem:[%s1 + $0x1c] sm:$0xf]
  %v42 = vld [vmem:[%s1 + $0x20] sm:$0xf]
  %v43 = vld [vmem:[%s1 + $0x24] sm:$0xf]
  %v44 = vld [vmem:[%s1 + $0x28] sm:$0xf]
  %v45 = vld [vmem:[%s1 + $0x2c] sm:$0xf]
  %v46 = vld [vmem:[%s1 + $0x30] sm:$0xf]
  %v47 = vld [vmem:[%s1 + $0x34] sm:$0xf]
  %v48 = vld [vmem:[%s1 + $0x38] sm:$0xf]
  %v49 = vld [vmem:[%s1 + $0x3c] sm:$0xf]
  %v50 = vld [vmem:[%s1 + $0x40] sm:$0xf]
  %v51 = vld [vmem:[%s1 + $0x44] sm:$0xf]
  %v52 = vld [vmem:[%s1 + $0x48] sm:$0xf]
  %v53 = vld [vmem:[%s1 + $0x4c] sm:$0xf]
  %v54 = vld [vmem:[%s1 + $0x50] sm:$0xf]
  %v55 = vld [vmem:[%s1 + $0x54] sm:$0xf]
  %v56 = vld [vmem:[%s1 + $0x58] sm:$0xf]
  %v57 = vld [vmem:[%s1 + $0x5c] sm:$0xf]
  %v58 = vld [vmem:[%s1 + $0x60] sm:$0xf]
  %v59 = vld [vmem:[%s1 + $0x64] sm:$0xf]
  %v60 = vld [vmem:[%s1 + $0x68] sm:$0xf]
  %v61 = vld [vmem:[%s1 + $0x6c] sm:$0xf]
  %v62 = vld [vmem:[%s1 + $0x70] sm:$0xf]
  %v63 = vld [vmem:[%s1 + $0x74] sm:$0xf]
  %v64 = vld [vmem:[%s1 + $0x78] sm:$0xf]
  %v65 = vld [vmem:[%s1 + $0x7c] sm:$0xf]
  %v82 = vunpack.c.l.b16 %v18
  %v83 = vunpack.c.h.b16 %v18
  %v84 = vunpack.c.l.b16 %v19
  %v85 = vunpack.c.h.b16 %v19
  %v86 = vunpack.c.l.b16 %v20
  %v87 = vunpack.c.h.b16 %v20
  %v88 = vunpack.c.l.b16 %v21
  %v89 = vunpack.c.h.b16 %v21
  %v90 = vunpack.c.l.b16 %v22
  %v91 = vunpack.c.h.b16 %v22
  %v92 = vunpack.c.l.b16 %v23
  %v93 = vunpack.c.h.b16 %v23
  %v94 = vunpack.c.l.b16 %v24
  %v95 = vunpack.c.h.b16 %v24
  %v96 = vunpack.c.l.b16 %v25
  %v97 = vunpack.c.h.b16 %v25
  %v98 = vunpack.c.l.b16 %v26
  %v99 = vunpack.c.h.b16 %v26
  %v100 = vunpack.c.l.b16 %v27
  %v101 = vunpack.c.h.b16 %v27
  %v102 = vunpack.c.l.b16 %v28
  %v103 = vunpack.c.h.b16 %v28
  %v104 = vunpack.c.l.b16 %v29
  %v105 = vunpack.c.h.b16 %v29
  %v106 = vunpack.c.l.b16 %v30
  %v107 = vunpack.c.h.b16 %v30
  %v108 = vunpack.c.l.b16 %v31
  %v109 = vunpack.c.h.b16 %v31
  %v110 = vunpack.c.l.b16 %v32
  %v111 = vunpack.c.h.b16 %v32
  %v112 = vunpack.c.l.b16 %v33
  %v113 = vunpack.c.h.b16 %v33
  %v114 = vpack.c.b16 %v84, %v82
  %v115 = vpack.c.b16 %v85, %v83
  %v116 = vpack.c.b16 %v88, %v86
  %v117 = vpack.c.b16 %v89, %v87
  %v118 = vpack.c.b16 %v92, %v90
  %v119 = vpack.c.b16 %v93, %v91
  %v120 = vpack.c.b16 %v96, %v94
  %v121 = vpack.c.b16 %v97, %v95
  %v122 = vpack.c.b16 %v100, %v98
  %v123 = vpack.c.b16 %v101, %v99
  %v124 = vpack.c.b16 %v104, %v102
  %v125 = vpack.c.b16 %v105, %v103
  %v126 = vpack.c.b16 %v108, %v106
  %v127 = vpack.c.b16 %v109, %v107
  %v128 = vpack.c.b16 %v112, %v110
  %v129 = vpack.c.b16 %v113, %v111
  %v178 = vunpack.c.l.b16 %v34
  %v179 = vunpack.c.l.b16 %v35
  %v180 = vunpack.c.l.b16 %v36
  %v181 = vunpack.c.l.b16 %v37
  %v182 = vunpack.c.l.b16 %v38
  %v183 = vunpack.c.l.b16 %v39
  %v184 = vunpack.c.l.b16 %v40
  %v185 = vunpack.c.l.b16 %v41
  %v186 = vunpack.c.l.b16 %v42
  %v187 = vunpack.c.l.b16 %v43
  %v188 = vunpack.c.l.b16 %v44
  %v189 = vunpack.c.l.b16 %v45
  %v190 = vunpack.c.l.b16 %v46
  %v191 = vunpack.c.l.b16 %v47
  %v192 = vunpack.c.l.b16 %v48
  %v193 = vunpack.c.l.b16 %v49
  %v194 = vunpack.c.l.b16 %v50
  %v195 = vunpack.c.l.b16 %v51
  %v196 = vunpack.c.l.b16 %v52
  %v197 = vunpack.c.l.b16 %v53
  %v198 = vunpack.c.l.b16 %v54
  %v199 = vunpack.c.l.b16 %v55
  %v200 = vunpack.c.l.b16 %v56
  %v201 = vunpack.c.l.b16 %v57
  %v202 = vunpack.c.l.b16 %v58
  %v203 = vunpack.c.l.b16 %v59
  %v204 = vunpack.c.l.b16 %v60
  %v205 = vunpack.c.l.b16 %v61
  %v206 = vunpack.c.l.b16 %v62
  %v207 = vunpack.c.l.b16 %v63
  %v208 = vunpack.c.l.b16 %v64
  %v209 = vunpack.c.l.b16 %v65
  %v210 = vpack.c.b16 %v179, %v178
  %v211 = vpack.c.b16 %v181, %v180
  %v212 = vpack.c.b16 %v183, %v182
  %v213 = vpack.c.b16 %v185, %v184
  %v214 = vpack.c.b16 %v187, %v186
  %v215 = vpack.c.b16 %v189, %v188
  %v216 = vpack.c.b16 %v191, %v190
  %v217 = vpack.c.b16 %v193, %v192
  %v218 = vpack.c.b16 %v195, %v194
  %v219 = vpack.c.b16 %v197, %v196
  %v220 = vpack.c.b16 %v199, %v198
  %v221 = vpack.c.b16 %v201, %v200
  %v222 = vpack.c.b16 %v203, %v202
  %v223 = vpack.c.b16 %v205, %v204
  %v224 = vpack.c.b16 %v207, %v206
  %v225 = vpack.c.b16 %v209, %v208
  %242 = vmatprep.subr.bf16.mxu0 0
  %243 = vmatpush1.bf16.msra.mxu0 %v210
  %244 = vmatprep.subr.bf16.mxu0 0
  %245 = vmatpush1.bf16.msra.mxu0 %v211
  %246 = vmatprep.subr.bf16.mxu0 0
  %247 = vmatpush1.bf16.msra.mxu0 %v212
  %248 = vmatprep.subr.bf16.mxu0 0
  %249 = vmatpush1.bf16.msra.mxu0 %v213
  %250 = vmatprep.subr.bf16.mxu0 0
  %251 = vmatpush1.bf16.msra.mxu0 %v214
  %252 = vmatprep.subr.bf16.mxu0 0
  %253 = vmatpush1.bf16.msra.mxu0 %v215
  %254 = vmatprep.subr.bf16.mxu0 0
  %255 = vmatpush1.bf16.msra.mxu0 %v216
  %256 = vmatprep.subr.bf16.mxu0 0
  %257 = vmatpush1.bf16.msra.mxu0 %v217
  %258 = vmatprep.subr.bf16.mxu0 0
  %259 = vmatpush1.bf16.msra.mxu0 %v218
  %260 = vmatprep.subr.bf16.mxu0 0
  %261 = vmatpush1.bf16.msra.mxu0 %v219
  %262 = vmatprep.subr.bf16.mxu0 0
  %263 = vmatpush1.bf16.msra.mxu0 %v220
  %264 = vmatprep.subr.bf16.mxu0 0
  %265 = vmatpush1.bf16.msra.mxu0 %v221
  %266 = vmatprep.subr.bf16.mxu0 0
  %267 = vmatpush1.bf16.msra.mxu0 %v222
  %268 = vmatprep.subr.bf16.mxu0 0
  %269 = vmatpush1.bf16.msra.mxu0 %v223
  %270 = vmatprep.subr.bf16.mxu0 0
  %271 = vmatpush1.bf16.msra.mxu0 %v224
  %272 = vmatprep.subr.bf16.mxu0 0
  %273 = vmatpush1.bf16.msra.mxu0 %v225
  %274 = vmatprep.mubr.bf16.mxu0 %v115
  %275 = vmatmul.mubr.bf16.gmra.mrb[0].mxu0 %v114
  %v276 = vpop.f32.mrb[0].mxu0
  %v277 = vadd.f32 0.0, %v276
  %v278 = vpop.f32.mrb[0].mxu0
  %v279 = vpop.f32.mrb[0].mxu0
  %v280 = vadd.f32 0.0, %v279
  %v281 = vpop.f32.mrb[0].mxu0
  %282 = vmatprep.mubr.bf16.mxu0 %v117
  %283 = vmatmul.mubr.bf16.gmra.mrb[0].mxu0 %v116
  %v284 = vpop.f32.mrb[0].mxu0
  %v285 = vadd.f32 0.0, %v284
  %v286 = vpop.f32.mrb[0].mxu0
  %v287 = vpop.f32.mrb[0].mxu0
  %v288 = vadd.f32 0.0, %v287
  %v289 = vpop.f32.mrb[0].mxu0
  %290 = vmatprep.mubr.bf16.mxu0 %v119
  %291 = vmatmul.mubr.bf16.gmra.mrb[0].mxu0 %v118
  %v292 = vpop.f32.mrb[0].mxu0
  %v293 = vadd.f32 0.0, %v292
  %v294 = vpop.f32.mrb[0].mxu0
  %v295 = vpop.f32.mrb[0].mxu0
  %v296 = vadd.f32 0.0, %v295
  %v297 = vpop.f32.mrb[0].mxu0
  %298 = vmatprep.mubr.bf16.mxu0 %v121
  %299 = vmatmul.mubr.bf16.gmra.mrb[0].mxu0 %v120
  %v300 = vpop.f32.mrb[0].mxu0
  %v301 = vadd.f32 0.0, %v300
  %v302 = vpop.f32.mrb[0].mxu0
  %v303 = vpop.f32.mrb[0].mxu0
  %v304 = vadd.f32 0.0, %v303
  %v305 = vpop.f32.mrb[0].mxu0
  %306 = vmatprep.mubr.bf16.mxu0 %v123
  %307 = vmatmul.mubr.bf16.gmra.mrb[0].mxu0 %v122
  %v308 = vpop.f32.mrb[0].mxu0
  %v309 = vadd.f32 0.0, %v308
  %v310 = vpop.f32.mrb[0].mxu0
  %v311 = vpop.f32.mrb[0].mxu0
  %v312 = vadd.f32 0.0, %v311
  %v313 = vpop.f32.mrb[0].mxu0
  %314 = vmatprep.mubr.bf16.mxu0 %v125
  %315 = vmatmul.mubr.bf16.gmra.mrb[0].mxu0 %v124
  %v316 = vpop.f32.mrb[0].mxu0
  %v317 = vadd.f32 0.0, %v316
  %v318 = vpop.f32.mrb[0].mxu0
  %v319 = vpop.f32.mrb[0].mxu0
  %v320 = vadd.f32 0.0, %v319
  %v321 = vpop.f32.mrb[0].mxu0
  %322 = vmatprep.mubr.bf16.mxu0 %v127
  %323 = vmatmul.mubr.bf16.gmra.mrb[0].mxu0 %v126
  %v324 = vpop.f32.mrb[0].mxu0
  %v325 = vadd.f32 0.0, %v324
  %v326 = vpop.f32.mrb[0].mxu0
  %v327 = vpop.f32.mrb[0].mxu0
  %v328 = vadd.f32 0.0, %v327
  %v329 = vpop.f32.mrb[0].mxu0
  %330 = vmatprep.mubr.bf16.mxu0 %v129
  %331 = vmatmul.mubr.bf16.gmra.mrb[0].mxu0 %v128
  %v332 = vpop.f32.mrb[0].mxu0
  %v333 = vadd.f32 0.0, %v332
  %v334 = vpop.f32.mrb[0].mxu0
  %v335 = vpop.f32.mrb[0].mxu0
  %v336 = vadd.f32 0.0, %v335
  %v337 = vpop.f32.mrb[0].mxu0
  %338 = vdwg.mxu0
  %v339 = vld [vmem:[%s2] sm:$0x1]
  %v341 = vlaneseq
  %v342 = vshrl.u32 %v341, 7
  %v343 = vsub.s32 0, %v342
  %v344 = vrot.slane %v339, %v343
  %v346 = vmul.f32 %v277, %v344
  %v347 = vmul.f32 %v280, %v344
  %v348 = vmul.f32 %v285, %v344
  %v349 = vmul.f32 %v288, %v344
  %v350 = vmul.f32 %v293, %v344
  %v351 = vmul.f32 %v296, %v344
  %v352 = vmul.f32 %v301, %v344
  %v353 = vmul.f32 %v304, %v344
  %v354 = vmul.f32 %v309, %v344
  %v355 = vmul.f32 %v312, %v344
  %v356 = vmul.f32 %v317, %v344
  %v357 = vmul.f32 %v320, %v344
  %v358 = vmul.f32 %v325, %v344
  %v359 = vmul.f32 %v328, %v344
  %v360 = vmul.f32 %v333, %v344
  %v361 = vmul.f32 %v336, %v344
  %v362 = vld [vmem:[%s3] sm:$0x1]
  %v364 = vlaneseq
  %v365 = vshrl.u32 %v364, 7
  %v366 = vsub.s32 0, %v365
  %v367 = vrot.slane %v362, %v366
  %v369 = vadd.f32 %v346, %v367
  %v370 = vadd.f32 %v347, %v367
  %v371 = vadd.f32 %v348, %v367
  %v372 = vadd.f32 %v349, %v367
  %v373 = vadd.f32 %v350, %v367
  %v374 = vadd.f32 %v351, %v367
  %v375 = vadd.f32 %v352, %v367
  %v376 = vadd.f32 %v353, %v367
  %v377 = vadd.f32 %v354, %v367
  %v378 = vadd.f32 %v355, %v367
  %v379 = vadd.f32 %v356, %v367
  %v380 = vadd.f32 %v357, %v367
  %v381 = vadd.f32 %v358, %v367
  %v382 = vadd.f32 %v359, %v367
  %v383 = vadd.f32 %v360, %v367
  %v384 = vadd.f32 %v361, %v367
  %v385 = vmax.f32 %v369, 0.0
  %v386 = vmax.f32 %v370, 0.0
  %v387 = vmax.f32 %v371, 0.0
  %v388 = vmax.f32 %v372, 0.0
  %v389 = vmax.f32 %v373, 0.0
  %v390 = vmax.f32 %v374, 0.0
  %v391 = vmax.f32 %v375, 0.0
  %v392 = vmax.f32 %v376, 0.0
  %v393 = vmax.f32 %v377, 0.0
  %v394 = vmax.f32 %v378, 0.0
  %v395 = vmax.f32 %v379, 0.0
  %v396 = vmax.f32 %v380, 0.0
  %v397 = vmax.f32 %v381, 0.0
  %v398 = vmax.f32 %v382, 0.0
  %v399 = vmax.f32 %v383, 0.0
  %v400 = vmax.f32 %v384, 0.0
  %401 = vst [vmem:[%s4] sm:$0xff] %v385
  %402 = vst [vmem:[%s4 + $0x8] sm:$0xff] %v386
  %403 = vst [vmem:[%s4 + $0x10] sm:$0xff] %v387
  %404 = vst [vmem:[%s4 + $0x18] sm:$0xff] %v388
  %405 = vst [vmem:[%s4 + $0x20] sm:$0xff] %v389
  %406 = vst [vmem:[%s4 + $0x28] sm:$0xff] %v390
  %407 = vst [vmem:[%s4 + $0x30] sm:$0xff] %v391
  %408 = vst [vmem:[%s4 + $0x38] sm:$0xff] %v392
  %409 = vst [vmem:[%s4 + $0x40] sm:$0xff] %v393
  %410 = vst [vmem:[%s4 + $0x48] sm:$0xff] %v394
  %411 = vst [vmem:[%s4 + $0x50] sm:$0xff] %v395
  %412 = vst [vmem:[%s4 + $0x58] sm:$0xff] %v396
  %413 = vst [vmem:[%s4 + $0x60] sm:$0xff] %v397
  %414 = vst [vmem:[%s4 + $0x68] sm:$0xff] %v398
  %415 = vst [vmem:[%s4 + $0x70] sm:$0xff] %v399
  %416 = vst [vmem:[%s4 + $0x78] sm:$0xff] %v400
  // Predicated region
  $region18: #{_fused_matmul.1} parent=0 // pred_check
    _
  $region19: #{_fused_matmul.1} parent=0 // pred_check_branch
    %418 = sbr.rel (0) target = $region21
  $region20: #{_fused_matmul.1} parent=0 // pred_region
    _
  $region21: #{_fused_matmul.1} parent=0 // pred_fallthru
    _
  // Predicated region
  $region22: #{_fused_matmul.1} parent=0 // pred_check
    _
  $region23: #{_fused_matmul.1} parent=0 // pred_check_branch
    %420 = sbr.rel (0) target = $region25
  $region24: #{_fused_matmul.1} parent=0 // pred_region
    _
  $region25: #{_fused_matmul.1} parent=0 // pred_fallthru
    _

</llo_original>
